<compile_context>
chip_gen: v7x
topology: tpu7x:2x2x1
jax: 0.10.0
libtpu: 0.0.40
codegen_flags: <defaults>
</compile_context>

<pallas_src>
import functools

import jax
import jax.numpy as jnp
from jax.experimental import pallas as pl
from jax.experimental.pallas import tpu as pltpu

BN_EPS = 1e-5


def graph_encoder_kernel(adj_ref, x_ref, wg_ref, ag_ref,
                         w1_ref, gamma_ref, beta_ref, ap_ref,
                         w2_ref, b2_ref, out_ref, *, matmul_dtype):
    G, N, _ = adj_ref.shape
    Fin = x_ref.shape[-1]

    # In-kernel cast: inputs arrive as f32 over a single DMA, MXU operands are
    # produced in VMEM (no extra HBM pass in the wrapper).
    adj = adj_ref[...].astype(matmul_dtype)                              # [G,N,N]
    x = x_ref[...].astype(matmul_dtype)                                  # [G,N,Fin]

    # ---- GNN (reassociated): z = (adj @ X) @ Wg ; PReLU -----------------------
    ax = jnp.einsum('gij,gjf->gif', adj, x,
                    preferred_element_type=jnp.float32)                  # [G,N,Fin]
    z = jnp.dot(ax.reshape(G * N, Fin).astype(matmul_dtype),
                wg_ref[...].astype(matmul_dtype),
                preferred_element_type=jnp.float32)                      # [G*N,512]
    a_g = ag_ref[0, 0]                                                   # SMEM scalar
    reps = jnp.where(z >= 0, z, a_g * z)                                 # f32

    # ---- projector Linear(512, H); bias b1 cancelled exactly by training BN ---
    h = jnp.dot(reps.astype(matmul_dtype), w1_ref[...].astype(matmul_dtype),
                preferred_element_type=jnp.float32)                      # [G*N,H]
    H = h.shape[-1]
    h3 = h.reshape(G, N, H)

    # ---- BatchNorm1d(H): per-graph training-mode stats, single fused pass -----
    inv_n = 1.0 / N
    s1 = jnp.sum(h3, axis=1, keepdims=True)                              # [G,1,H]
    s2 = jnp.sum(h3 * h3, axis=1, keepdims=True)                         # [G,1,H]
    mean = s1 * inv_n
    var = s2 * inv_n - mean * mean                                       # biased var
    hn = (h3 - mean) * jax.lax.rsqrt(var + BN_EPS)
    hn = hn * gamma_ref[...] + beta_ref[...]                             # [G,N,H]

    # ---- PReLU (single shared slope) -------------------------------------------
    a_p = ap_ref[0, 0]                                                   # SMEM scalar
    hp = jnp.where(hn >= 0, hn, a_p * hn)

    # ---- projector Linear(H, P_pad) : lane-dense (P padded to x128) store ------
    o = jnp.dot(hp.reshape(G * N, H).astype(matmul_dtype),
                w2_ref[...].astype(matmul_dtype),
                preferred_element_type=jnp.float32) + b2_ref[...]
    out_ref[...] = o.reshape(G, N, -1)


def _largest_divisor_leq(b, cap):
    g = 1
    for d in range(1, min(b, cap) + 1):
        if b % d == 0:
            g = d
    return g


def graph_encoder_forward(adj, in_feats, params, *, matmul_dtype=jnp.bfloat16,
                          max_graphs_per_step=8):
    """Fused GraphEncoder forward.

    adj:      [B, N, N] (or [N, N]) dense normalized adjacency, float32
    in_feats: [B, N, Fin] (or [N, Fin]) node features, float32
    returns:  [B, N, P] (or [N, P]) float32 projections

    G graphs are processed per grid step ("parallel" axis -> both TCs on v7x).
    BatchNorm statistics are computed over the node axis of each graph,
    matching one PyTorch forward call per graph.
    """
    squeeze = adj.ndim == 2
    if squeeze:
        adj = adj[None]
        in_feats = in_feats[None]

    B, N, _ = adj.shape
    Fin = in_feats.shape[-1]
    D = params["wg"].shape[1]          # GNN output (512, hard-coded by projector)
    H = params["w1"].shape[1]
    P = params["w2"].shape[1]

    # Lane-dense output: pad last projector dim to a multiple of 128 (zeros in
    # W2 / b2); the store becomes an unmasked full-lane vst, wrapper slices back.
    P_pad = 128 * pl.cdiv(P, 128)
    w2, b2 = params["w2"], params["b2"]
    if P_pad != P:
        w2 = jnp.pad(w2, ((0, 0), (0, P_pad - P)))
        b2 = jnp.pad(b2, ((0, 0), (0, P_pad - P)))

    # Graphs per grid step: always a divisor of B (no padding copy of adj).
    G = _largest_divisor_leq(B, max_graphs_per_step)

    # ---- VMEM budget (double-buffered I/O blocks + resident weights + f32
    #      intermediates), with headroom; clamped to v7x's 64 MiB physical VMEM.
    f32 = 4
    io_bytes = 2 * f32 * (G * N * N + G * N * Fin + G * N * P_pad)
    w_bytes = 2 * f32 * (Fin * D + D * H + H * P_pad + 2 * H + P_pad)
    inter_bytes = f32 * G * N * (Fin + 2 * D + 4 * H + 2 * P_pad)
    vmem_limit = int(min(max(2 * (io_bytes + w_bytes + inter_bytes), 32 << 20),
                         64 << 20))

    # ---- advisory cost estimate for XLA scheduling around the custom call -----
    flops_per_graph = (2 * N * N * Fin + 2 * N * Fin * D
                       + 2 * N * D * H + 2 * N * H * P_pad)
    cost = pl.CostEstimate(
        flops=int(B * flops_per_graph),
        transcendentals=int(B * H),                     # rsqrt per BN column
        bytes_accessed=int(f32 * (B * N * N + B * N * Fin + B * N * P_pad
                                  + Fin * D + D * H + H * P_pad
                                  + 4 * H + P_pad + 2)),
    )

    kernel = functools.partial(graph_encoder_kernel, matmul_dtype=matmul_dtype)
    smem = pltpu.MemorySpace.SMEM

    out = pl.pallas_call(
        kernel,
        out_shape=jax.ShapeDtypeStruct((B, N, P_pad), jnp.float32),
        grid=(B // G,),
        in_specs=[
            pl.BlockSpec((G, N, N), lambda b: (b, 0, 0)),       # adj  (f32 DMA)
            pl.BlockSpec((G, N, Fin), lambda b: (b, 0, 0)),     # X    (f32 DMA)
            pl.BlockSpec((Fin, D), lambda b: (0, 0)),           # Wg   (resident)
            pl.BlockSpec(memory_space=smem),                    # GNN PReLU slope
            pl.BlockSpec((D, H), lambda b: (0, 0)),             # W1   (resident)
            pl.BlockSpec((1, H), lambda b: (0, 0)),             # gamma
            pl.BlockSpec((1, H), lambda b: (0, 0)),             # beta
            pl.BlockSpec(memory_space=smem),                    # proj PReLU slope
            pl.BlockSpec((H, P_pad), lambda b: (0, 0)),         # W2   (padded)
            pl.BlockSpec((1, P_pad), lambda b: (0, 0)),         # b2   (padded)
        ],
        out_specs=pl.BlockSpec((G, N, P_pad), lambda b: (b, 0, 0)),
        compiler_params=pltpu.CompilerParams(
            dimension_semantics=("parallel",),
            vmem_limit_bytes=vmem_limit),
        cost_estimate=cost,
    )(adj, in_feats, params["wg"], params["ag"], params["w1"],
      params["gamma"], params["beta"], params["ap"], w2, b2)

    if P_pad != P:
        out = out[..., :P]
    return out[0] if squeeze else out


def _reference_forward(adj, x, p):
    """Pure-JAX f32 reference with the ORIGINAL association and the b1 bias."""
    z = adj @ (x @ p["wg"])
    reps = jnp.where(z >= 0, z, p["ag"][0, 0] * z)
    h = reps @ p["w1"] + p["b1"]
    mean = jnp.mean(h, axis=0, keepdims=True)
    var = jnp.mean((h - mean) ** 2, axis=0, keepdims=True)
    hn = (h - mean) / jnp.sqrt(var + BN_EPS) * p["gamma"] + p["beta"]
    hp = jnp.where(hn >= 0, hn, p["ap"][0, 0] * hn)
    return hp @ p["w2"] + p["b2"]


def make_params(key, fin, gnn_out, proj_hidden, proj_size):
    ks = jax.random.split(key, 6)
    return {
        # GNN weight  [Fin, 512]
        "wg": jax.random.normal(ks[0], (fin, gnn_out), jnp.float32) * 0.05,
        # PReLU slope of the GNN (single shared parameter, PyTorch init 0.25)
        "ag": jnp.full((1, 1), 0.25, jnp.float32),
        # projector Linear(512, H)  (b1 exists in the module; the kernel drops it
        # because training-mode BatchNorm cancels it exactly — only the reference
        # uses it)
        "w1": jax.random.normal(ks[1], (gnn_out, proj_hidden), jnp.float32) * 0.05,
        "b1": jax.random.normal(ks[2], (1, proj_hidden), jnp.float32) * 0.05,
        # BatchNorm1d(H) affine params (PyTorch init: gamma=1, beta=0)
        "gamma": jnp.ones((1, proj_hidden), jnp.float32),
        "beta": jnp.zeros((1, proj_hidden), jnp.float32),
        # projector PReLU slope
        "ap": jnp.full((1, 1), 0.25, jnp.float32),
        # projector Linear(H, P)
        "w2": jax.random.normal(ks[3], (proj_hidden, proj_size), jnp.float32) * 0.05,
        "b2": jax.random.normal(ks[4], (1, proj_size), jnp.float32) * 0.05,
    }


if __name__ == "__main__":
    key = jax.random.PRNGKey(0)
    k_adj, k_x, k_p = jax.random.split(key, 3)

    # Small shapes consistent with the module: batch of 2 graphs, 16 nodes,
    # 32 input feats, GNN output 512 (hard-coded by the projector), H=64, P=32.
    B, N, FIN, GNN_OUT, PROJ_HIDDEN, PROJ_SIZE = 2, 16, 32, 512, 64, 32

    # Dense, row-normalized adjacency with self-loops per graph (deterministic).
    a_raw = (jax.random.uniform(k_adj, (B, N, N)) > 0.7).astype(jnp.float32)
    a_sym = jnp.maximum(a_raw, jnp.swapaxes(a_raw, -1, -2)) + jnp.eye(N, dtype=jnp.float32)
    adj = a_sym / jnp.sum(a_sym, axis=-1, keepdims=True)

    in_feats = jax.random.normal(k_x, (B, N, FIN), jnp.float32)
    params = make_params(k_p, FIN, GNN_OUT, PROJ_HIDDEN, PROJ_SIZE)

    ref = jnp.stack([_reference_forward(adj[b], in_feats[b], params)
                     for b in range(B)])

    # 1) f32 matmul path: proves the algebraic changes (reassociation, b1 drop,
    #    fused E[x^2]-mean^2 BN stats, output padding) match the original
    #    semantics.
    out_f32 = jax.block_until_ready(
        graph_encoder_forward(adj, in_feats, params, matmul_dtype=jnp.float32))
    assert out_f32.shape == (B, N, PROJ_SIZE)
    assert jnp.allclose(out_f32, ref, atol=1e-4, rtol=1e-4), \
        "f32 kernel mismatch vs JAX reference"

    # 2) recommended bf16-MXU path (f32 accumulate / f32 elementwise): looser
    #    tolerance only because of bf16 operand rounding.
    out_bf16 = jax.block_until_ready(
        graph_encoder_forward(adj, in_feats, params, matmul_dtype=jnp.bfloat16))
    assert out_bf16.shape == (B, N, PROJ_SIZE)
    assert jnp.allclose(out_bf16, ref, atol=5e-2, rtol=5e-2), \
        "bf16 kernel mismatch vs JAX reference"

    print("KERNEL_OK")
</pallas_src>

<mosaic_0001>
module attributes {stable_mosaic.version = 11 : i64} {
  func.func @graph_encoder_kernel(%arg0: i32, %arg1: memref<2x16x16xf32, #tpu.memory_space<vmem>>, %arg2: memref<2x16x32xf32, #tpu.memory_space<vmem>>, %arg3: memref<32x512xf32, #tpu.memory_space<vmem>>, %arg4: memref<1x1xf32, #tpu.memory_space<smem>>, %arg5: memref<512x64xf32, #tpu.memory_space<vmem>>, %arg6: memref<1x64xf32, #tpu.memory_space<vmem>>, %arg7: memref<1x64xf32, #tpu.memory_space<vmem>>, %arg8: memref<1x1xf32, #tpu.memory_space<smem>>, %arg9: memref<64x128xf32, #tpu.memory_space<vmem>>, %arg10: memref<1x128xf32, #tpu.memory_space<vmem>>, %arg11: memref<2x16x128xf32, #tpu.memory_space<vmem>>) attributes {dimension_semantics = [#tpu.dimension_semantics<parallel>], iteration_bounds = array<i64: 1>, scalar_prefetch = 0 : i64, scratch_operands = 0 : i64, tpu.core_type = #tpu.core_type<tc>, window_params = [{transform_indices = @transform_0, window_bounds = array<i64: 2, 16, 16>}, {transform_indices = @transform_1, window_bounds = array<i64: 2, 16, 32>}, {pipeline_mode = #tpu.pipeline_mode<synchronous>, transform_indices = @transform_2, window_bounds = array<i64: 32, 512>}, {transform_indices = @transform_3, window_bounds = array<i64: 1, 1>}, {pipeline_mode = #tpu.pipeline_mode<synchronous>, transform_indices = @transform_4, window_bounds = array<i64: 512, 64>}, {pipeline_mode = #tpu.pipeline_mode<synchronous>, transform_indices = @transform_5, window_bounds = array<i64: 1, 64>}, {pipeline_mode = #tpu.pipeline_mode<synchronous>, transform_indices = @transform_6, window_bounds = array<i64: 1, 64>}, {transform_indices = @transform_7, window_bounds = array<i64: 1, 1>}, {pipeline_mode = #tpu.pipeline_mode<synchronous>, transform_indices = @transform_8, window_bounds = array<i64: 64, 128>}, {pipeline_mode = #tpu.pipeline_mode<synchronous>, transform_indices = @transform_9, window_bounds = array<i64: 1, 128>}, {transform_indices = @transform_10, window_bounds = array<i64: 2, 16, 128>}]} {
    %c0 = arith.constant 0 : index
    %c0_0 = arith.constant 0 : index
    %c0_1 = arith.constant 0 : index
    %0 = vector.load %arg1[%c0, %c0_0, %c0_1] : memref<2x16x16xf32, #tpu.memory_space<vmem>>, vector<2x16x16xf32>
    %c0_2 = arith.constant 0 : index
    %c0_3 = arith.constant 0 : index
    %c0_4 = arith.constant 0 : index
    %1 = vector.load %arg2[%c0_2, %c0_3, %c0_4] : memref<2x16x32xf32, #tpu.memory_space<vmem>>, vector<2x16x32xf32>
    "tpu.trace_start"() <{level = 10 : i32, message = "gij,gjf->gif"}> : () -> ()
    %cst = arith.constant dense<0.000000e+00> : vector<2x16x32xf32>
    %2 = tpu.matmul %0, %1, %cst {dimension_numbers = #tpu.dot_dimension_numbers<[2], [1], [1], [2], [0, 0, 0, 1, 1, 2], [0], [0]>} : vector<2x16x16xf32>, vector<2x16x32xf32>, vector<2x16x32xf32> -> vector<2x16x32xf32>
    "tpu.trace_stop"() : () -> ()
    %3 = vector.shape_cast %2 : vector<2x16x32xf32> to vector<32x32xf32>
    %c0_5 = arith.constant 0 : index
    %c0_6 = arith.constant 0 : index
    %4 = vector.load %arg3[%c0_5, %c0_6] : memref<32x512xf32, #tpu.memory_space<vmem>>, vector<32x512xf32>
    %cst_7 = arith.constant dense<0.000000e+00> : vector<32x512xf32>
    %5 = tpu.matmul %3, %4, %cst_7 {dimension_numbers = #tpu.dot_dimension_numbers<[1], [0], [0], [1], [0, 0, 1, 1], [], []>} : vector<32x32xf32>, vector<32x512xf32>, vector<32x512xf32> -> vector<32x512xf32>
    %c0_8 = arith.constant 0 : index
    %c0_9 = arith.constant 0 : index
    %6 = memref.load %arg4[%c0_8, %c0_9] : memref<1x1xf32, #tpu.memory_space<smem>>
    %cst_10 = arith.constant 0.000000e+00 : f32
    %7 = vector.broadcast %cst_10 : f32 to vector<32x512xf32>
    %8 = arith.cmpf oge, %5, %7 : vector<32x512xf32>
    %9 = vector.broadcast %6 : f32 to vector<32x512xf32>
    %10 = arith.mulf %9, %5 : vector<32x512xf32>
    %11 = arith.select %8, %5, %10 : vector<32x512xi1>, vector<32x512xf32>
    %c0_11 = arith.constant 0 : index
    %c0_12 = arith.constant 0 : index
    %12 = vector.load %arg5[%c0_11, %c0_12] : memref<512x64xf32, #tpu.memory_space<vmem>>, vector<512x64xf32>
    %cst_13 = arith.constant dense<0.000000e+00> : vector<32x64xf32>
    %13 = tpu.matmul %11, %12, %cst_13 {dimension_numbers = #tpu.dot_dimension_numbers<[1], [0], [0], [1], [0, 0, 1, 1], [], []>} : vector<32x512xf32>, vector<512x64xf32>, vector<32x64xf32> -> vector<32x64xf32>
    %14 = vector.shape_cast %13 : vector<32x64xf32> to vector<2x16x64xf32>
    %cst_14 = arith.constant dense<0.000000e+00> : vector<2x64xf32>
    %15 = vector.multi_reduction <add>, %14, %cst_14 [1] : vector<2x16x64xf32> to vector<2x64xf32>
    %16 = vector.shape_cast %15 : vector<2x64xf32> to vector<2x1x64xf32>
    %17 = arith.mulf %14, %14 : vector<2x16x64xf32>
    %cst_15 = arith.constant dense<0.000000e+00> : vector<2x64xf32>
    %18 = vector.multi_reduction <add>, %17, %cst_15 [1] : vector<2x16x64xf32> to vector<2x64xf32>
    %19 = vector.shape_cast %18 : vector<2x64xf32> to vector<2x1x64xf32>
    %cst_16 = arith.constant 6.250000e-02 : f32
    %20 = vector.broadcast %cst_16 : f32 to vector<2x1x64xf32>
    %21 = arith.mulf %16, %20 : vector<2x1x64xf32>
    %cst_17 = arith.constant 6.250000e-02 : f32
    %22 = vector.broadcast %cst_17 : f32 to vector<2x1x64xf32>
    %23 = arith.mulf %19, %22 : vector<2x1x64xf32>
    %24 = arith.mulf %21, %21 : vector<2x1x64xf32>
    %25 = arith.subf %23, %24 : vector<2x1x64xf32>
    %26 = vector.broadcast %21 : vector<2x1x64xf32> to vector<2x16x64xf32>
    %27 = arith.subf %14, %26 : vector<2x16x64xf32>
    %cst_18 = arith.constant 9.99999974E-6 : f32
    %28 = vector.broadcast %cst_18 : f32 to vector<2x1x64xf32>
    %29 = arith.addf %25, %28 : vector<2x1x64xf32>
    %30 = math.rsqrt %29 : vector<2x1x64xf32>
    %31 = vector.broadcast %30 : vector<2x1x64xf32> to vector<2x16x64xf32>
    %32 = arith.mulf %27, %31 : vector<2x16x64xf32>
    %c0_19 = arith.constant 0 : index
    %c0_20 = arith.constant 0 : index
    %33 = vector.load %arg6[%c0_19, %c0_20] : memref<1x64xf32, #tpu.memory_space<vmem>>, vector<1x64xf32>
    %34 = vector.shape_cast %33 : vector<1x64xf32> to vector<1x1x64xf32>
    %35 = vector.broadcast %34 : vector<1x1x64xf32> to vector<2x16x64xf32>
    %36 = arith.mulf %32, %35 : vector<2x16x64xf32>
    %c0_21 = arith.constant 0 : index
    %c0_22 = arith.constant 0 : index
    %37 = vector.load %arg7[%c0_21, %c0_22] : memref<1x64xf32, #tpu.memory_space<vmem>>, vector<1x64xf32>
    %38 = vector.shape_cast %37 : vector<1x64xf32> to vector<1x1x64xf32>
    %39 = vector.broadcast %38 : vector<1x1x64xf32> to vector<2x16x64xf32>
    %40 = arith.addf %36, %39 : vector<2x16x64xf32>
    %c0_23 = arith.constant 0 : index
    %c0_24 = arith.constant 0 : index
    %41 = memref.load %arg8[%c0_23, %c0_24] : memref<1x1xf32, #tpu.memory_space<smem>>
    %cst_25 = arith.constant 0.000000e+00 : f32
    %42 = vector.broadcast %cst_25 : f32 to vector<2x16x64xf32>
    %43 = arith.cmpf oge, %40, %42 : vector<2x16x64xf32>
    %44 = vector.broadcast %41 : f32 to vector<2x16x64xf32>
    %45 = arith.mulf %44, %40 : vector<2x16x64xf32>
    %46 = arith.select %43, %40, %45 : vector<2x16x64xi1>, vector<2x16x64xf32>
    %47 = vector.shape_cast %46 : vector<2x16x64xf32> to vector<32x64xf32>
    %c0_26 = arith.constant 0 : index
    %c0_27 = arith.constant 0 : index
    %48 = vector.load %arg9[%c0_26, %c0_27] : memref<64x128xf32, #tpu.memory_space<vmem>>, vector<64x128xf32>
    %cst_28 = arith.constant dense<0.000000e+00> : vector<32x128xf32>
    %49 = tpu.matmul %47, %48, %cst_28 {dimension_numbers = #tpu.dot_dimension_numbers<[1], [0], [0], [1], [0, 0, 1, 1], [], []>} : vector<32x64xf32>, vector<64x128xf32>, vector<32x128xf32> -> vector<32x128xf32>
    %c0_29 = arith.constant 0 : index
    %c0_30 = arith.constant 0 : index
    %50 = vector.load %arg10[%c0_29, %c0_30] : memref<1x128xf32, #tpu.memory_space<vmem>>, vector<1x128xf32>
    %51 = vector.broadcast %50 : vector<1x128xf32> to vector<32x128xf32>
    %52 = arith.addf %49, %51 : vector<32x128xf32>
    %53 = vector.shape_cast %52 : vector<32x128xf32> to vector<2x16x128xf32>
    %c0_31 = arith.constant 0 : index
    %c0_32 = arith.constant 0 : index
    %c0_33 = arith.constant 0 : index
    %54 = vector.load %arg11[%c0_31, %c0_32, %c0_33] : memref<2x16x128xf32, #tpu.memory_space<vmem>>, vector<2x16x128xf32>
    tpu.vector_store %arg11[%c0_31, %c0_32, %c0_33], %53 {strides = array<i32>} : memref<2x16x128xf32, #tpu.memory_space<vmem>>, vector<2x16x128xf32>,
    return
  }
  func.func @transform_0(%arg0: i32) -> (i32, i32, i32) {
    %c0_i32 = arith.constant 0 : i32
    %c0_i32_0 = arith.constant 0 : i32
    %c0_i32_1 = arith.constant 0 : i32
    return %arg0, %c0_i32, %c0_i32_0 : i32, i32, i32
  }
  func.func @transform_1(%arg0: i32) -> (i32, i32, i32) {
    %c0_i32 = arith.constant 0 : i32
    %c0_i32_0 = arith.constant 0 : i32
    %c0_i32_1 = arith.constant 0 : i32
    return %arg0, %c0_i32, %c0_i32_0 : i32, i32, i32
  }
  func.func @transform_2(%arg0: i32) -> (i32, i32) {
    %c0_i32 = arith.constant 0 : i32
    %c0_i32_0 = arith.constant 0 : i32
    %c0_i32_1 = arith.constant 0 : i32
    return %c0_i32, %c0_i32_0 : i32, i32
  }
  func.func @transform_3(%arg0: i32) -> (i32, i32) {
    %c0_i32 = arith.constant 0 : i32
    %c0_i32_0 = arith.constant 0 : i32
    %c0_i32_1 = arith.constant 0 : i32
    return %c0_i32, %c0_i32_0 : i32, i32
  }
  func.func @transform_4(%arg0: i32) -> (i32, i32) {
    %c0_i32 = arith.constant 0 : i32
    %c0_i32_0 = arith.constant 0 : i32
    %c0_i32_1 = arith.constant 0 : i32
    return %c0_i32, %c0_i32_0 : i32, i32
  }
  func.func @transform_5(%arg0: i32) -> (i32, i32) {
    %c0_i32 = arith.constant 0 : i32
    %c0_i32_0 = arith.constant 0 : i32
    %c0_i32_1 = arith.constant 0 : i32
    return %c0_i32, %c0_i32_0 : i32, i32
  }
  func.func @transform_6(%arg0: i32) -> (i32, i32) {
    %c0_i32 = arith.constant 0 : i32
    %c0_i32_0 = arith.constant 0 : i32
    %c0_i32_1 = arith.constant 0 : i32
    return %c0_i32, %c0_i32_0 : i32, i32
  }
  func.func @transform_7(%arg0: i32) -> (i32, i32) {
    %c0_i32 = arith.constant 0 : i32
    %c0_i32_0 = arith.constant 0 : i32
    %c0_i32_1 = arith.constant 0 : i32
    return %c0_i32, %c0_i32_0 : i32, i32
  }
  func.func @transform_8(%arg0: i32) -> (i32, i32) {
    %c0_i32 = arith.constant 0 : i32
    %c0_i32_0 = arith.constant 0 : i32
    %c0_i32_1 = arith.constant 0 : i32
    return %c0_i32, %c0_i32_0 : i32, i32
  }
  func.func @transform_9(%arg0: i32) -> (i32, i32) {
    %c0_i32 = arith.constant 0 : i32
    %c0_i32_0 = arith.constant 0 : i32
    %c0_i32_1 = arith.constant 0 : i32
    return %c0_i32, %c0_i32_0 : i32, i32
  }
  func.func @transform_10(%arg0: i32) -> (i32, i32, i32) {
    %c0_i32 = arith.constant 0 : i32
    %c0_i32_0 = arith.constant 0 : i32
    %c0_i32_1 = arith.constant 0 : i32
    return %arg0, %c0_i32, %c0_i32_0 : i32, i32, i32
  }
}

</mosaic_0001>

<llo_original>
// kernel: tpu_custom_call.1
$region0: #{tpu_custom_call.1}
  #allocation0 [shape = 'u32[]', space=smem, size = 0x4, offset = 0x4, fixed_abs, tag = 'smem constant byte address 0x4 - core index']
  #allocation1 [shape = 'u32[144,128]{1,0:T(1,128)}', space=vmem, size = 0x12000, scoped, tag = 'internal scratch']
  #allocation2 [shape = 'f32[1,1]{1,0:T(1,128)S(6)}', space=smem, size = 0x200, scoped, tag = 'scoped memory for tpu_custom_call.1']
  #allocation3 [shape = 'f32[1,1]{1,0:T(1,128)S(6)}', space=smem, size = 0x200, scoped, tag = 'scoped memory for tpu_custom_call.1']
  %s0 = inlined_call_operand.vmem [shape: f32[2,16,16], index: 0, kind: input, shape index: {}]
  %s1 = inlined_call_operand.vmem [shape: f32[2,16,32], index: 1, kind: input, shape index: {}]
  %s2 = inlined_call_operand.vmem [shape: f32[32,512], index: 2, kind: input, shape index: {}]
  %s3 = inlined_call_operand.<no memory space> [shape: f32[1,1], index: 3, kind: input, shape index: {}]
  %s4 = inlined_call_operand.vmem [shape: f32[512,64], index: 4, kind: input, shape index: {}]
  %s5 = inlined_call_operand.vmem [shape: f32[1,64], index: 5, kind: input, shape index: {}]
  %s6 = inlined_call_operand.vmem [shape: f32[1,64], index: 6, kind: input, shape index: {}]
  %s7 = inlined_call_operand.<no memory space> [shape: f32[1,1], index: 7, kind: input, shape index: {}]
  %s8 = inlined_call_operand.vmem [shape: f32[64,128], index: 8, kind: input, shape index: {}]
  %s9 = inlined_call_operand.vmem [shape: f32[1,128], index: 9, kind: input, shape index: {}]
  %s10 = inlined_call_operand.hbm [shape: f32[2,16,128], index: 10, kind: output, shape index: {}]
  %s11 = sld [smem:[#allocation0]]
  $region50: #{tpu_custom_call.1} parent=0
    _
  %s13 = ssub.s32 1, %s11
  %s14 = scalar_select 0, %s13, %s11
  %15 = sst [smem:[#allocation2]] %s3
  %16 = sst [smem:[#allocation3]] %s7
  $region1: #{tpu_custom_call.1} parent=0
    #allocation4 [shape = 'u8[16384]{0}', space=vmem, size = 0x4000, scoped, tag = 'output window, operand 0, single buffered']
    #allocation5 [shape = 's32[1]{0}', space=sflag, size = 0x4, scoped, tag = 'scoped memory for tpu_custom_call.1']
    %17 = vsyncpa [#allocation5], 0
    // Predicated region
    $region2: #{tpu_custom_call.1} parent=1 // pred_check
      _
    $region3: #{tpu_custom_call.1} parent=1 // pred_check_branch
      %19 = sbr.rel (0) target = $region5
    $region4: #{tpu_custom_call.1} parent=1 // pred_region
      _
    $region5: #{tpu_custom_call.1} parent=1 // pred_fallthru
      _
    // Predicated region
    $region6: #{tpu_custom_call.1} parent=1 // pred_check
      _
    $region7: #{tpu_custom_call.1} parent=1 // pred_check_branch
      %21 = sbr.rel (0) target = $region9
    $region8: #{tpu_custom_call.1} parent=1 // pred_region
      _
    $region9: #{tpu_custom_call.1} parent=1 // pred_fallthru
      _
    // Predicated region
    $region10: #{tpu_custom_call.1} parent=1 // pred_check
      _
    $region11: #{tpu_custom_call.1} parent=1 // pred_check_branch
      %23 = sbr.rel (0) target = $region13
    $region12: #{tpu_custom_call.1} parent=1 // pred_region
      _
    $region13: #{tpu_custom_call.1} parent=1 // pred_fallthru
      _
    // Predicated region
    $region14: #{tpu_custom_call.1} parent=1 // pred_check
      _
    $region15: #{tpu_custom_call.1} parent=1 // pred_check_branch
      %25 = sbr.rel (0) target = $region17
    $region16: #{tpu_custom_call.1} parent=1 // pred_region
      _
    $region17: #{tpu_custom_call.1} parent=1 // pred_fallthru
      _
    // Predicated region
    $region18: #{tpu_custom_call.1} parent=1 // pred_check
      _
    $region19: #{tpu_custom_call.1} parent=1 // pred_check_branch
      %27 = sbr.rel (0) target = $region21
    $region20: #{tpu_custom_call.1} parent=1 // pred_region
      _
    $region21: #{tpu_custom_call.1} parent=1 // pred_fallthru
      _
    // Predicated region
    $region22: #{tpu_custom_call.1} parent=1 // pred_check
      _
    $region23: #{tpu_custom_call.1} parent=1 // pred_check_branch
      %29 = sbr.rel (0) target = $region25
    $region24: #{tpu_custom_call.1} parent=1 // pred_region
      _
    $region25: #{tpu_custom_call.1} parent=1 // pred_fallthru
      _
    // Predicated region
    $region26: #{tpu_custom_call.1} parent=1 // pred_check
      _
    $region27: #{tpu_custom_call.1} parent=1 // pred_check_branch
      %31 = sbr.rel (0) target = $region29
    $region28: #{tpu_custom_call.1} parent=1 // pred_region
      _
    $region29: #{tpu_custom_call.1} parent=1 // pred_fallthru
      _
    // Predicated region
    $region30: #{tpu_custom_call.1} parent=1 // pred_check
      _
    $region31: #{tpu_custom_call.1} parent=1 // pred_check_branch
      %33 = sbr.rel (0) target = $region33
    $region32: #{tpu_custom_call.1} parent=1 // pred_region
      _
    $region33: #{tpu_custom_call.1} parent=1 // pred_fallthru
      _
    // Predicated region
    $region34: #{tpu_custom_call.1} parent=1 // pred_check
      _
    $region35: #{tpu_custom_call.1} parent=1 // pred_check_branch
      %35 = sbr.rel (0) target = $region37
    $region36: #{tpu_custom_call.1} parent=1 // pred_region
      _
    $region37: #{tpu_custom_call.1} parent=1 // pred_fallthru
      _
    // Predicated region
    $region38: #{tpu_custom_call.1} parent=1 // pred_check
      _
    $region39: #{tpu_custom_call.1} parent=1 // pred_check_branch
      %37 = sbr.rel (0) target = $region41
    $region40: #{tpu_custom_call.1} parent=1 // pred_region
      _
    $region41: #{tpu_custom_call.1} parent=1 // pred_fallthru
      _
    %v38 = vld [vmem:[%s0] sm:$0xff]
    %v39 = vld [vmem:[%s0 + $0x8] sm:$0xff]
    %v40 = vld [vmem:[%s0 + $0x10] sm:$0xff]
    %v41 = vld [vmem:[%s0 + $0x18] sm:$0xff]
    %v42 = vld [vmem:[%s1] sm:$0xff]
    %v43 = vld [vmem:[%s1 + $0x8] sm:$0xff]
    %v44 = vld [vmem:[%s1 + $0x10] sm:$0xff]
    %v45 = vld [vmem:[%s1 + $0x18] sm:$0xff]
    %vm46 = vcmask 130048
    %v48 = vsel %vm46, %v38, 0
    %v51 = vsel %vm46, %v39, 0
    %53 = vmatprep.subr.mxu0 0.0
    %54 = vmatpush1.msra.mxu0 %v42
    %55 = vmatprep.subr.mxu0 0.0
    %56 = vmatpush1.msra.mxu0 %v43
    %57 = vmatprep.subr.mxu0 0.0
    %58 = vmatpush1.msra.mxu0 0.0
    %59 = vmatprep.subr.mxu0 0.0
    %60 = vmatpush1.msra.mxu0 0.0
    %61 = vmatprep.subr.mxu0 0.0
    %62 = vmatpush1.msra.mxu0 0.0
    %63 = vmatprep.subr.mxu0 0.0
    %64 = vmatpush1.msra.mxu0 0.0
    %65 = vmatprep.subr.mxu0 0.0
    %66 = vmatpush1.msra.mxu0 0.0
    %67 = vmatprep.subr.mxu0 0.0
    %68 = vmatpush1.msra.mxu0 0.0
    %69 = vmatprep.subr.mxu0 0.0
    %70 = vmatpush1.msra.mxu0 0.0
    %71 = vmatprep.subr.mxu0 0.0
    %72 = vmatpush1.msra.mxu0 0.0
    %73 = vmatprep.subr.mxu0 0.0
    %74 = vmatpush1.msra.mxu0 0.0
    %75 = vmatprep.subr.mxu0 0.0
    %76 = vmatpush1.msra.mxu0 0.0
    %77 = vmatprep.subr.mxu0 0.0
    %78 = vmatpush1.msra.mxu0 0.0
    %79 = vmatprep.subr.mxu0 0.0
    %80 = vmatpush1.msra.mxu0 0.0
    %81 = vmatprep.subr.mxu0 0.0
    %82 = vmatpush1.msra.mxu0 0.0
    %83 = vmatprep.subr.mxu0 0.0
    %84 = vmatpush1.msra.mxu0 0.0
    %85 = vmatprep.subr.mxu0 0.0
    %86 = vmatpush1.msra.mxu0 0.0
    %87 = vmatprep.subr.mxu0 0.0
    %88 = vmatpush1.msra.mxu0 0.0
    %89 = vmatprep.subr.mxu0 0.0
    %90 = vmatpush1.msra.mxu0 0.0
    %91 = vmatprep.subr.mxu0 0.0
    %92 = vmatpush1.msra.mxu0 0.0
    %93 = vmatprep.subr.mxu0 0.0
    %94 = vmatpush1.msra.mxu0 0.0
    %95 = vmatprep.subr.mxu0 0.0
    %96 = vmatpush1.msra.mxu0 0.0
    %97 = vmatprep.subr.mxu0 0.0
    %98 = vmatpush1.msra.mxu0 0.0
    %99 = vmatprep.subr.mxu0 0.0
    %100 = vmatpush1.msra.mxu0 0.0
    %101 = vmatprep.subr.mxu0 0.0
    %102 = vmatpush1.msra.mxu0 0.0
    %103 = vmatprep.subr.mxu0 0.0
    %104 = vmatpush1.msra.mxu0 0.0
    %105 = vmatprep.subr.mxu0 0.0
    %106 = vmatpush1.msra.mxu0 0.0
    %107 = vmatprep.subr.mxu0 0.0
    %108 = vmatpush1.msra.mxu0 0.0
    %109 = vmatprep.subr.mxu0 0.0
    %110 = vmatpush1.msra.mxu0 0.0
    %111 = vmatprep.subr.mxu0 0.0
    %112 = vmatpush1.msra.mxu0 0.0
    %113 = vmatprep.subr.mxu0 0.0
    %114 = vmatpush1.msra.mxu0 0.0
    %115 = vmatprep.subr.mxu0 0.0
    %116 = vmatpush1.msra.mxu0 0.0
    %117 = vmatprep.mubr.f32.mxu0 0.0
    %118 = vmatmul.mubr.f32.gmra.mrb[0].mxu0 %v48
    %v119 = vpop.f32.mrb[0].mxu0
    %v120 = vadd.f32 0.0, %v119
    %v121 = vpop.f32.mrb[0].mxu0
    %122 = vmatprep.mubr.f32.mxu0 0.0
    %123 = vmatmul.mubr.f32.gmra.mrb[0].mxu0 %v51
    %v124 = vpop.f32.mrb[0].mxu0
    %v125 = vadd.f32 0.0, %v124
    %v126 = vpop.f32.mrb[0].mxu0
    %127 = vdwg.mxu0
    %v129 = vsel %vm46, %v40, 0
    %v132 = vsel %vm46, %v41, 0
    %134 = vmatprep.subr.mxu0 0.0
    %135 = vmatpush1.msra.mxu0 %v44
    %136 = vmatprep.subr.mxu0 0.0
    %137 = vmatpush1.msra.mxu0 %v45
    %138 = vmatprep.subr.mxu0 0.0
    %139 = vmatpush1.msra.mxu0 0.0
    %140 = vmatprep.subr.mxu0 0.0
    %141 = vmatpush1.msra.mxu0 0.0
    %142 = vmatprep.subr.mxu0 0.0
    %143 = vmatpush1.msra.mxu0 0.0
    %144 = vmatprep.subr.mxu0 0.0
    %145 = vmatpush1.msra.mxu0 0.0
    %146 = vmatprep.subr.mxu0 0.0
    %147 = vmatpush1.msra.mxu0 0.0
    %148 = vmatprep.subr.mxu0 0.0
    %149 = vmatpush1.msra.mxu0 0.0
    %150 = vmatprep.subr.mxu0 0.0
    %151 = vmatpush1.msra.mxu0 0.0
    %152 = vmatprep.subr.mxu0 0.0
    %153 = vmatpush1.msra.mxu0 0.0
    %154 = vmatprep.subr.mxu0 0.0
    %155 = vmatpush1.msra.mxu0 0.0
    %156 = vmatprep.subr.mxu0 0.0
    %157 = vmatpush1.msra.mxu0 0.0
    %158 = vmatprep.subr.mxu0 0.0
    %159 = vmatpush1.msra.mxu0 0.0
    %160 = vmatprep.subr.mxu0 0.0
    %161 = vmatpush1.msra.mxu0 0.0
    %162 = vmatprep.subr.mxu0 0.0
    %163 = vmatpush1.msra.mxu0 0.0
    %164 = vmatprep.subr.mxu0 0.0
    %165 = vmatpush1.msra.mxu0 0.0
    %166 = vmatprep.subr.mxu0 0.0
    %167 = vmatpush1.msra.mxu0 0.0
    %168 = vmatprep.subr.mxu0 0.0
    %169 = vmatpush1.msra.mxu0 0.0
    %170 = vmatprep.subr.mxu0 0.0
    %171 = vmatpush1.msra.mxu0 0.0
    %172 = vmatprep.subr.mxu0 0.0
    %173 = vmatpush1.msra.mxu0 0.0
    %174 = vmatprep.subr.mxu0 0.0
    %175 = vmatpush1.msra.mxu0 0.0
    %176 = vmatprep.subr.mxu0 0.0
    %177 = vmatpush1.msra.mxu0 0.0
    %178 = vmatprep.subr.mxu0 0.0
    %179 = vmatpush1.msra.mxu0 0.0
    %180 = vmatprep.subr.mxu0 0.0
    %181 = vmatpush1.msra.mxu0 0.0
    %182 = vmatprep.subr.mxu0 0.0
    %183 = vmatpush1.msra.mxu0 0.0
    %184 = vmatprep.subr.mxu0 0.0
    %185 = vmatpush1.msra.mxu0 0.0
    %186 = vmatprep.subr.mxu0 0.0
    %187 = vmatpush1.msra.mxu0 0.0
    %188 = vmatprep.subr.mxu0 0.0
    %189 = vmatpush1.msra.mxu0 0.0
    %190 = vmatprep.subr.mxu0 0.0
    %191 = vmatpush1.msra.mxu0 0.0
    %192 = vmatprep.subr.mxu0 0.0
    %193 = vmatpush1.msra.mxu0 0.0
    %194 = vmatprep.subr.mxu0 0.0
    %195 = vmatpush1.msra.mxu0 0.0
    %196 = vmatprep.subr.mxu0 0.0
    %197 = vmatpush1.msra.mxu0 0.0
    %198 = vmatprep.mubr.f32.mxu0 0.0
    %199 = vmatmul.mubr.f32.gmra.mrb[0].mxu0 %v129
    %v200 = vpop.f32.mrb[0].mxu0
    %v201 = vadd.f32 0.0, %v200
    %v202 = vpop.f32.mrb[0].mxu0
    %203 = vmatprep.mubr.f32.mxu0 0.0
    %204 = vmatmul.mubr.f32.gmra.mrb[0].mxu0 %v132
    %v205 = vpop.f32.mrb[0].mxu0
    %v206 = vadd.f32 0.0, %v205
    %v207 = vpop.f32.mrb[0].mxu0
    %208 = vdwg.mxu0
    %v209 = vld [vmem:[%s2] sm:$0xff]
    %v210 = vld [vmem:[%s2 + $0x8] sm:$0xff]
    %v211 = vld [vmem:[%s2 + $0x10] sm:$0xff]
    %v212 = vld [vmem:[%s2 + $0x18] sm:$0xff]
    %v213 = vld [vmem:[%s2 + $0x20] sm:$0xff]
    %v214 = vld [vmem:[%s2 + $0x28] sm:$0xff]
    %v215 = vld [vmem:[%s2 + $0x30] sm:$0xff]
    %v216 = vld [vmem:[%s2 + $0x38] sm:$0xff]
    %v217 = vld [vmem:[%s2 + $0x40] sm:$0xff]
    %v218 = vld [vmem:[%s2 + $0x48] sm:$0xff]
    %v219 = vld [vmem:[%s2 + $0x50] sm:$0xff]
    %v220 = vld [vmem:[%s2 + $0x58] sm:$0xff]
    %v221 = vld [vmem:[%s2 + $0x60] sm:$0xff]
    %v222 = vld [vmem:[%s2 + $0x68] sm:$0xff]
    %v223 = vld [vmem:[%s2 + $0x70] sm:$0xff]
    %v224 = vld [vmem:[%s2 + $0x78] sm:$0xff]
    %vm225 = vcmask 261120
    %v227 = vsel %vm225, %v120, 0
    %v230 = vsel %vm225, %v125, 0
    %v233 = vsel %vm225, %v201, 0
    %v236 = vsel %vm225, %v206, 0
    %238 = vmatprep.subr.mxu0 %v210
    %239 = vmatpush1.msra.mxu0 %v209
    %240 = vmatprep.subr.mxu0 %v214
    %241 = vmatpush1.msra.mxu0 %v213
    %242 = vmatprep.subr.mxu0 %v218
    %243 = vmatpush1.msra.mxu0 %v217
    %244 = vmatprep.subr.mxu0 %v222
    %245 = vmatpush1.msra.mxu0 %v221
    %246 = vmatprep.subr.mxu0 0.0
    %247 = vmatpush1.msra.mxu0 0.0
    %248 = vmatprep.subr.mxu0 0.0
    %249 = vmatpush1.msra.mxu0 0.0
    %250 = vmatprep.subr.mxu0 0.0
    %251 = vmatpush1.msra.mxu0 0.0
    %252 = vmatprep.subr.mxu0 0.0
    %253 = vmatpush1.msra.mxu0 0.0
    %254 = vmatprep.subr.mxu0 0.0
    %255 = vmatpush1.msra.mxu0 0.0
    %256 = vmatprep.subr.mxu0 0.0
    %257 = vmatpush1.msra.mxu0 0.0
    %258 = vmatprep.subr.mxu0 0.0
    %259 = vmatpush1.msra.mxu0 0.0
    %260 = vmatprep.subr.mxu0 0.0
    %261 = vmatpush1.msra.mxu0 0.0
    %262 = vmatprep.subr.mxu0 0.0
    %263 = vmatpush1.msra.mxu0 0.0
    %264 = vmatprep.subr.mxu0 0.0
    %265 = vmatpush1.msra.mxu0 0.0
    %266 = vmatprep.subr.mxu0 0.0
    %267 = vmatpush1.msra.mxu0 0.0
    %268 = vmatprep.subr.mxu0 0.0
    %269 = vmatpush1.msra.mxu0 0.0
    %270 = vmatprep.subr.mxu0 0.0
    %271 = vmatpush1.msra.mxu0 0.0
    %272 = vmatprep.subr.mxu0 0.0
    %273 = vmatpush1.msra.mxu0 0.0
    %274 = vmatprep.subr.mxu0 0.0
    %275 = vmatpush1.msra.mxu0 0.0
    %276 = vmatprep.subr.mxu0 0.0
    %277 = vmatpush1.msra.mxu0 0.0
    %278 = vmatprep.subr.mxu0 0.0
    %279 = vmatpush1.msra.mxu0 0.0
    %280 = vmatprep.subr.mxu0 0.0
    %281 = vmatpush1.msra.mxu0 0.0
    %282 = vmatprep.subr.mxu0 0.0
    %283 = vmatpush1.msra.mxu0 0.0
    %284 = vmatprep.subr.mxu0 0.0
    %285 = vmatpush1.msra.mxu0 0.0
    %286 = vmatprep.subr.mxu0 0.0
    %287 = vmatpush1.msra.mxu0 0.0
    %288 = vmatprep.subr.mxu0 0.0
    %289 = vmatpush1.msra.mxu0 0.0
    %290 = vmatprep.subr.mxu0 0.0
    %291 = vmatpush1.msra.mxu0 0.0
    %292 = vmatprep.subr.mxu0 0.0
    %293 = vmatpush1.msra.mxu0 0.0
    %294 = vmatprep.subr.mxu0 0.0
    %295 = vmatpush1.msra.mxu0 0.0
    %296 = vmatprep.subr.mxu0 0.0
    %297 = vmatpush1.msra.mxu0 0.0
    %298 = vmatprep.subr.mxu0 0.0
    %299 = vmatpush1.msra.mxu0 0.0
    %300 = vmatprep.subr.mxu0 0.0
    %301 = vmatpush1.msra.mxu0 0.0
    %302 = vmatprep.mubr.f32.mxu0 0.0
    %303 = vmatmul.mubr.f32.gmra.mrb[0].mxu0 %v227
    %v304 = vpop.f32.mrb[0].mxu0
    %v305 = vadd.f32 0.0, %v304
    %v306 = vpop.f32.mrb[0].mxu0
    %v307 = vadd.f32 0.0, %v306
    %308 = vmatprep.mubr.f32.mxu0 0.0
    %309 = vmatmul.mubr.f32.gmra.mrb[0].mxu0 %v230
    %v310 = vpop.f32.mrb[0].mxu0
    %v311 = vadd.f32 0.0, %v310
    %v312 = vpop.f32.mrb[0].mxu0
    %v313 = vadd.f32 0.0, %v312
    %314 = vmatprep.mubr.f32.mxu0 0.0
    %315 = vmatmul.mubr.f32.gmra.mrb[0].mxu0 %v233
    %v316 = vpop.f32.mrb[0].mxu0
    %v317 = vadd.f32 0.0, %v316
    %v318 = vpop.f32.mrb[0].mxu0
    %v319 = vadd.f32 0.0, %v318
    %320 = vmatprep.mubr.f32.mxu0 0.0
    %321 = vmatmul.mubr.f32.gmra.mrb[0].mxu0 %v236
    %v322 = vpop.f32.mrb[0].mxu0
    %v323 = vadd.f32 0.0, %v322
    %v324 = vpop.f32.mrb[0].mxu0
    %v325 = vadd.f32 0.0, %v324
    %326 = vdwg.mxu0
    %327 = vmatprep.subr.mxu0 %v212
    %328 = vmatpush1.msra.mxu0 %v211
    %329 = vmatprep.subr.mxu0 %v216
    %330 = vmatpush1.msra.mxu0 %v215
    %331 = vmatprep.subr.mxu0 %v220
    %332 = vmatpush1.msra.mxu0 %v219
    %333 = vmatprep.subr.mxu0 %v224
    %334 = vmatpush1.msra.mxu0 %v223
    %335 = vmatprep.subr.mxu0 0.0
    %336 = vmatpush1.msra.mxu0 0.0
    %337 = vmatprep.subr.mxu0 0.0
    %338 = vmatpush1.msra.mxu0 0.0
    %339 = vmatprep.subr.mxu0 0.0
    %340 = vmatpush1.msra.mxu0 0.0
    %341 = vmatprep.subr.mxu0 0.0
    %342 = vmatpush1.msra.mxu0 0.0
    %343 = vmatprep.subr.mxu0 0.0
    %344 = vmatpush1.msra.mxu0 0.0
    %345 = vmatprep.subr.mxu0 0.0
    %346 = vmatpush1.msra.mxu0 0.0
    %347 = vmatprep.subr.mxu0 0.0
    %348 = vmatpush1.msra.mxu0 0.0
    %349 = vmatprep.subr.mxu0 0.0
    %350 = vmatpush1.msra.mxu0 0.0
    %351 = vmatprep.subr.mxu0 0.0
    %352 = vmatpush1.msra.mxu0 0.0
    %353 = vmatprep.subr.mxu0 0.0
    %354 = vmatpush1.msra.mxu0 0.0
    %355 = vmatprep.subr.mxu0 0.0
    %356 = vmatpush1.msra.mxu0 0.0
    %357 = vmatprep.subr.mxu0 0.0
    %358 = vmatpush1.msra.mxu0 0.0
    %359 = vmatprep.subr.mxu0 0.0
    %360 = vmatpush1.msra.mxu0 0.0
    %361 = vmatprep.subr.mxu0 0.0
    %362 = vmatpush1.msra.mxu0 0.0
    %363 = vmatprep.subr.mxu0 0.0
    %364 = vmatpush1.msra.mxu0 0.0
    %365 = vmatprep.subr.mxu0 0.0
    %366 = vmatpush1.msra.mxu0 0.0
    %367 = vmatprep.subr.mxu0 0.0
    %368 = vmatpush1.msra.mxu0 0.0
    %369 = vmatprep.subr.mxu0 0.0
    %370 = vmatpush1.msra.mxu0 0.0
    %371 = vmatprep.subr.mxu0 0.0
    %372 = vmatpush1.msra.mxu0 0.0
    %373 = vmatprep.subr.mxu0 0.0
    %374 = vmatpush1.msra.mxu0 0.0
    %375 = vmatprep.subr.mxu0 0.0
    %376 = vmatpush1.msra.mxu0 0.0
    %377 = vmatprep.subr.mxu0 0.0
    %378 = vmatpush1.msra.mxu0 0.0
    %379 = vmatprep.subr.mxu0 0.0
    %380 = vmatpush1.msra.mxu0 0.0
    %381 = vmatprep.subr.mxu0 0.0
    %382 = vmatpush1.msra.mxu0 0.0
    %383 = vmatprep.subr.mxu0 0.0
    %384 = vmatpush1.msra.mxu0 0.0
    %385 = vmatprep.subr.mxu0 0.0
    %386 = vmatpush1.msra.mxu0 0.0
    %387 = vmatprep.subr.mxu0 0.0
    %388 = vmatpush1.msra.mxu0 0.0
    %389 = vmatprep.subr.mxu0 0.0
    %390 = vmatpush1.msra.mxu0 0.0
    %391 = vmatprep.mubr.f32.mxu0 0.0
    %392 = vmatmul.mubr.f32.gmra.mrb[0].mxu0 %v227
    %v393 = vpop.f32.mrb[0].mxu0
    %v394 = vadd.f32 0.0, %v393
    %v395 = vpop.f32.mrb[0].mxu0
    %v396 = vadd.f32 0.0, %v395
    %397 = vmatprep.mubr.f32.mxu0 0.0
    %398 = vmatmul.mubr.f32.gmra.mrb[0].mxu0 %v230
    %v399 = vpop.f32.mrb[0].mxu0
    %v400 = vadd.f32 0.0, %v399
    %v401 = vpop.f32.mrb[0].mxu0
    %v402 = vadd.f32 0.0, %v401
    %403 = vmatprep.mubr.f32.mxu0 0.0
    %404 = vmatmul.mubr.f32.gmra.mrb[0].mxu0 %v233
    %v405 = vpop.f32.mrb[0].mxu0
    %v406 = vadd.f32 0.0, %v405
    %v407 = vpop.f32.mrb[0].mxu0
    %v408 = vadd.f32 0.0, %v407
    %409 = vmatprep.mubr.f32.mxu0 0.0
    %410 = vmatmul.mubr.f32.gmra.mrb[0].mxu0 %v236
    %v411 = vpop.f32.mrb[0].mxu0
    %v412 = vadd.f32 0.0, %v411
    %v413 = vpop.f32.mrb[0].mxu0
    %v414 = vadd.f32 0.0, %v413
    %415 = vdwg.mxu0
    %s416 = sld [smem:[#allocation2]]
    %vm417 = vcmp.ge.f32.partialorder %v305, 0.0
    %vm418 = vcmp.ge.f32.partialorder %v307, 0.0
    %vm419 = vcmp.ge.f32.partialorder %v394, 0.0
    %vm420 = vcmp.ge.f32.partialorder %v396, 0.0
    %vm421 = vcmp.ge.f32.partialorder %v311, 0.0
    %vm422 = vcmp.ge.f32.partialorder %v313, 0.0
    %vm423 = vcmp.ge.f32.partialorder %v400, 0.0
    %vm424 = vcmp.ge.f32.partialorder %v402, 0.0
    %vm425 = vcmp.ge.f32.partialorder %v317, 0.0
    %vm426 = vcmp.ge.f32.partialorder %v319, 0.0
    %vm427 = vcmp.ge.f32.partialorder %v406, 0.0
    %vm428 = vcmp.ge.f32.partialorder %v408, 0.0
    %vm429 = vcmp.ge.f32.partialorder %v323, 0.0
    %vm430 = vcmp.ge.f32.partialorder %v325, 0.0
    %vm431 = vcmp.ge.f32.partialorder %v412, 0.0
    %vm432 = vcmp.ge.f32.partialorder %v414, 0.0
    %v433 = vstv %s416
    %v434 = vmul.f32 %v433, %v305
    %v435 = vmul.f32 %v433, %v307
    %v436 = vmul.f32 %v433, %v394
    %v437 = vmul.f32 %v433, %v396
    %v438 = vmul.f32 %v433, %v311
    %v439 = vmul.f32 %v433, %v313
    %v440 = vmul.f32 %v433, %v400
    %v441 = vmul.f32 %v433, %v402
    %v442 = vmul.f32 %v433, %v317
    %v443 = vmul.f32 %v433, %v319
    %v444 = vmul.f32 %v433, %v406
    %v445 = vmul.f32 %v433, %v408
    %v446 = vmul.f32 %v433, %v323
    %v447 = vmul.f32 %v433, %v325
    %v448 = vmul.f32 %v433, %v412
    %v449 = vmul.f32 %v433, %v414
    %v450 = vsel %vm417, %v305, %v434
    %v451 = vsel %vm418, %v307, %v435
    %v452 = vsel %vm419, %v394, %v436
    %v453 = vsel %vm420, %v396, %v437
    %v454 = vsel %vm421, %v311, %v438
    %v455 = vsel %vm422, %v313, %v439
    %v456 = vsel %vm423, %v400, %v440
    %v457 = vsel %vm424, %v402, %v441
    %v458 = vsel %vm425, %v317, %v442
    %v459 = vsel %vm426, %v319, %v443
    %v460 = vsel %vm427, %v406, %v444
    %v461 = vsel %vm428, %v408, %v445
    %v462 = vsel %vm429, %v323, %v446
    %v463 = vsel %vm430, %v325, %v447
    %v464 = vsel %vm431, %v412, %v448
    %v465 = vsel %vm432, %v414, %v449
    %v466 = vld [vmem:[%s4] sm:$0xff]
    %v467 = vld [vmem:[%s4 + $0x8] sm:$0xff]
    %v468 = vld [vmem:[%s4 + $0x10] sm:$0xff]
    %v469 = vld [vmem:[%s4 + $0x18] sm:$0xff]
    %v470 = vld [vmem:[%s4 + $0x20] sm:$0xff]
    %v471 = vld [vmem:[%s4 + $0x28] sm:$0xff]
    %v472 = vld [vmem:[%s4 + $0x30] sm:$0xff]
    %v473 = vld [vmem:[%s4 + $0x38] sm:$0xff]
    %v474 = vld [vmem:[%s4 + $0x40] sm:$0xff]
    %v475 = vld [vmem:[%s4 + $0x48] sm:$0xff]
    %v476 = vld [vmem:[%s4 + $0x50] sm:$0xff]
    %v477 = vld [vmem:[%s4 + $0x58] sm:$0xff]
    %v478 = vld [vmem:[%s4 + $0x60] sm:$0xff]
    %v479 = vld [vmem:[%s4 + $0x68] sm:$0xff]
    %v480 = vld [vmem:[%s4 + $0x70] sm:$0xff]
    %v481 = vld [vmem:[%s4 + $0x78] sm:$0xff]
    %v482 = vld [vmem:[%s4 + $0x80] sm:$0xff]
    %v483 = vld [vmem:[%s4 + $0x88] sm:$0xff]
    %v484 = vld [vmem:[%s4 + $0x90] sm:$0xff]
    %v485 = vld [vmem:[%s4 + $0x98] sm:$0xff]
    %v486 = vld [vmem:[%s4 + $0xa0] sm:$0xff]
    %v487 = vld [vmem:[%s4 + $0xa8] sm:$0xff]
    %v488 = vld [vmem:[%s4 + $0xb0] sm:$0xff]
    %v489 = vld [vmem:[%s4 + $0xb8] sm:$0xff]
    %v490 = vld [vmem:[%s4 + $0xc0] sm:$0xff]
    %v491 = vld [vmem:[%s4 + $0xc8] sm:$0xff]
    %v492 = vld [vmem:[%s4 + $0xd0] sm:$0xff]
    %v493 = vld [vmem:[%s4 + $0xd8] sm:$0xff]
    %v494 = vld [vmem:[%s4 + $0xe0] sm:$0xff]
    %v495 = vld [vmem:[%s4 + $0xe8] sm:$0xff]
    %v496 = vld [vmem:[%s4 + $0xf0] sm:$0xff]
    %v497 = vld [vmem:[%s4 + $0xf8] sm:$0xff]
    %v498 = vld [vmem:[%s4 + $0x100] sm:$0xff]
    %v499 = vld [vmem:[%s4 + $0x108] sm:$0xff]
    %v500 = vld [vmem:[%s4 + $0x110] sm:$0xff]
    %v501 = vld [vmem:[%s4 + $0x118] sm:$0xff]
    %v502 = vld [vmem:[%s4 + $0x120] sm:$0xff]
    %v503 = vld [vmem:[%s4 + $0x128] sm:$0xff]
    %v504 = vld [vmem:[%s4 + $0x130] sm:$0xff]
    %v505 = vld [vmem:[%s4 + $0x138] sm:$0xff]
    %v506 = vld [vmem:[%s4 + $0x140] sm:$0xff]
    %v507 = vld [vmem:[%s4 + $0x148] sm:$0xff]
    %v508 = vld [vmem:[%s4 + $0x150] sm:$0xff]
    %v509 = vld [vmem:[%s4 + $0x158] sm:$0xff]
    %v510 = vld [vmem:[%s4 + $0x160] sm:$0xff]
    %v511 = vld [vmem:[%s4 + $0x168] sm:$0xff]
    %v512 = vld [vmem:[%s4 + $0x170] sm:$0xff]
    %v513 = vld [vmem:[%s4 + $0x178] sm:$0xff]
    %v514 = vld [vmem:[%s4 + $0x180] sm:$0xff]
    %v515 = vld [vmem:[%s4 + $0x188] sm:$0xff]
    %v516 = vld [vmem:[%s4 + $0x190] sm:$0xff]
    %v517 = vld [vmem:[%s4 + $0x198] sm:$0xff]
    %v518 = vld [vmem:[%s4 + $0x1a0] sm:$0xff]
    %v519 = vld [vmem:[%s4 + $0x1a8] sm:$0xff]
    %v520 = vld [vmem:[%s4 + $0x1b0] sm:$0xff]
    %v521 = vld [vmem:[%s4 + $0x1b8] sm:$0xff]
    %v522 = vld [vmem:[%s4 + $0x1c0] sm:$0xff]
    %v523 = vld [vmem:[%s4 + $0x1c8] sm:$0xff]
    %v524 = vld [vmem:[%s4 + $0x1d0] sm:$0xff]
    %v525 = vld [vmem:[%s4 + $0x1d8] sm:$0xff]
    %v526 = vld [vmem:[%s4 + $0x1e0] sm:$0xff]
    %v527 = vld [vmem:[%s4 + $0x1e8] sm:$0xff]
    %v528 = vld [vmem:[%s4 + $0x1f0] sm:$0xff]
    %v529 = vld [vmem:[%s4 + $0x1f8] sm:$0xff]
    %530 = vmatprep.subr.mxu0 0.0
    %531 = vmatpush1.msra.mxu0 %v466
    %532 = vmatprep.subr.mxu0 0.0
    %533 = vmatpush1.msra.mxu0 %v467
    %534 = vmatprep.subr.mxu0 0.0
    %535 = vmatpush1.msra.mxu0 %v468
    %536 = vmatprep.subr.mxu0 0.0
    %537 = vmatpush1.msra.mxu0 %v469
    %538 = vmatprep.subr.mxu0 0.0
    %539 = vmatpush1.msra.mxu0 %v470
    %540 = vmatprep.subr.mxu0 0.0
    %541 = vmatpush1.msra.mxu0 %v471
    %542 = vmatprep.subr.mxu0 0.0
    %543 = vmatpush1.msra.mxu0 %v472
    %544 = vmatprep.subr.mxu0 0.0
    %545 = vmatpush1.msra.mxu0 %v473
    %546 = vmatprep.subr.mxu0 0.0
    %547 = vmatpush1.msra.mxu0 %v474
    %548 = vmatprep.subr.mxu0 0.0
    %549 = vmatpush1.msra.mxu0 %v475
    %550 = vmatprep.subr.mxu0 0.0
    %551 = vmatpush1.msra.mxu0 %v476
    %552 = vmatprep.subr.mxu0 0.0
    %553 = vmatpush1.msra.mxu0 %v477
    %554 = vmatprep.subr.mxu0 0.0
    %555 = vmatpush1.msra.mxu0 %v478
    %556 = vmatprep.subr.mxu0 0.0
    %557 = vmatpush1.msra.mxu0 %v479
    %558 = vmatprep.subr.mxu0 0.0
    %559 = vmatpush1.msra.mxu0 %v480
    %560 = vmatprep.subr.mxu0 0.0
    %561 = vmatpush1.msra.mxu0 %v481
    %562 = vmatprep.subr.mxu0 0.0
    %563 = vmatpush1.msra.mxu0 %v482
    %564 = vmatprep.subr.mxu0 0.0
    %565 = vmatpush1.msra.mxu0 %v483
    %566 = vmatprep.subr.mxu0 0.0
    %567 = vmatpush1.msra.mxu0 %v484
    %568 = vmatprep.subr.mxu0 0.0
    %569 = vmatpush1.msra.mxu0 %v485
    %570 = vmatprep.subr.mxu0 0.0
    %571 = vmatpush1.msra.mxu0 %v486
    %572 = vmatprep.subr.mxu0 0.0
    %573 = vmatpush1.msra.mxu0 %v487
    %574 = vmatprep.subr.mxu0 0.0
    %575 = vmatpush1.msra.mxu0 %v488
    %576 = vmatprep.subr.mxu0 0.0
    %577 = vmatpush1.msra.mxu0 %v489
    %578 = vmatprep.subr.mxu0 0.0
    %579 = vmatpush1.msra.mxu0 %v490
    %580 = vmatprep.subr.mxu0 0.0
    %581 = vmatpush1.msra.mxu0 %v491
    %582 = vmatprep.subr.mxu0 0.0
    %583 = vmatpush1.msra.mxu0 %v492
    %584 = vmatprep.subr.mxu0 0.0
    %585 = vmatpush1.msra.mxu0 %v493
    %586 = vmatprep.subr.mxu0 0.0
    %587 = vmatpush1.msra.mxu0 %v494
    %588 = vmatprep.subr.mxu0 0.0
    %589 = vmatpush1.msra.mxu0 %v495
    %590 = vmatprep.subr.mxu0 0.0
    %591 = vmatpush1.msra.mxu0 %v496
    %592 = vmatprep.subr.mxu0 0.0
    %593 = vmatpush1.msra.mxu0 %v497
    %594 = vmatprep.mubr.f32.mxu0 %v451
    %595 = vmatmul.mubr.f32.gmra.mrb[0].mxu0 %v450
    %v596 = vpop.f32.mrb[0].mxu0
    %v597 = vadd.f32 0.0, %v596
    %v598 = vpop.f32.mrb[0].mxu0
    %599 = vmatprep.mubr.f32.mxu0 %v455
    %600 = vmatmul.mubr.f32.gmra.mrb[0].mxu0 %v454
    %v601 = vpop.f32.mrb[0].mxu0
    %v602 = vadd.f32 0.0, %v601
    %v603 = vpop.f32.mrb[0].mxu0
    %604 = vmatprep.mubr.f32.mxu0 %v459
    %605 = vmatmul.mubr.f32.gmra.mrb[0].mxu0 %v458
    %v606 = vpop.f32.mrb[0].mxu0
    %v607 = vadd.f32 0.0, %v606
    %v608 = vpop.f32.mrb[0].mxu0
    %609 = vmatprep.mubr.f32.mxu0 %v463
    %610 = vmatmul.mubr.f32.gmra.mrb[0].mxu0 %v462
    %v611 = vpop.f32.mrb[0].mxu0
    %v612 = vadd.f32 0.0, %v611
    %v613 = vpop.f32.mrb[0].mxu0
    %614 = vdwg.mxu0
    %615 = vmatprep.subr.mxu0 0.0
    %616 = vmatpush1.msra.mxu0 %v498
    %617 = vmatprep.subr.mxu0 0.0
    %618 = vmatpush1.msra.mxu0 %v499
    %619 = vmatprep.subr.mxu0 0.0
    %620 = vmatpush1.msra.mxu0 %v500
    %621 = vmatprep.subr.mxu0 0.0
    %622 = vmatpush1.msra.mxu0 %v501
    %623 = vmatprep.subr.mxu0 0.0
    %624 = vmatpush1.msra.mxu0 %v502
    %625 = vmatprep.subr.mxu0 0.0
    %626 = vmatpush1.msra.mxu0 %v503
    %627 = vmatprep.subr.mxu0 0.0
    %628 = vmatpush1.msra.mxu0 %v504
    %629 = vmatprep.subr.mxu0 0.0
    %630 = vmatpush1.msra.mxu0 %v505
    %631 = vmatprep.subr.mxu0 0.0
    %632 = vmatpush1.msra.mxu0 %v506
    %633 = vmatprep.subr.mxu0 0.0
    %634 = vmatpush1.msra.mxu0 %v507
    %635 = vmatprep.subr.mxu0 0.0
    %636 = vmatpush1.msra.mxu0 %v508
    %637 = vmatprep.subr.mxu0 0.0
    %638 = vmatpush1.msra.mxu0 %v509
    %639 = vmatprep.subr.mxu0 0.0
    %640 = vmatpush1.msra.mxu0 %v510
    %641 = vmatprep.subr.mxu0 0.0
    %642 = vmatpush1.msra.mxu0 %v511
    %643 = vmatprep.subr.mxu0 0.0
    %644 = vmatpush1.msra.mxu0 %v512
    %645 = vmatprep.subr.mxu0 0.0
    %646 = vmatpush1.msra.mxu0 %v513
    %647 = vmatprep.subr.mxu0 0.0
    %648 = vmatpush1.msra.mxu0 %v514
    %649 = vmatprep.subr.mxu0 0.0
    %650 = vmatpush1.msra.mxu0 %v515
    %651 = vmatprep.subr.mxu0 0.0
    %652 = vmatpush1.msra.mxu0 %v516
    %653 = vmatprep.subr.mxu0 0.0
    %654 = vmatpush1.msra.mxu0 %v517
    %655 = vmatprep.subr.mxu0 0.0
    %656 = vmatpush1.msra.mxu0 %v518
    %657 = vmatprep.subr.mxu0 0.0
    %658 = vmatpush1.msra.mxu0 %v519
    %659 = vmatprep.subr.mxu0 0.0
    %660 = vmatpush1.msra.mxu0 %v520
    %661 = vmatprep.subr.mxu0 0.0
    %662 = vmatpush1.msra.mxu0 %v521
    %663 = vmatprep.subr.mxu0 0.0
    %664 = vmatpush1.msra.mxu0 %v522
    %665 = vmatprep.subr.mxu0 0.0
    %666 = vmatpush1.msra.mxu0 %v523
    %667 = vmatprep.subr.mxu0 0.0
    %668 = vmatpush1.msra.mxu0 %v524
    %669 = vmatprep.subr.mxu0 0.0
    %670 = vmatpush1.msra.mxu0 %v525
    %671 = vmatprep.subr.mxu0 0.0
    %672 = vmatpush1.msra.mxu0 %v526
    %673 = vmatprep.subr.mxu0 0.0
    %674 = vmatpush1.msra.mxu0 %v527
    %675 = vmatprep.subr.mxu0 0.0
    %676 = vmatpush1.msra.mxu0 %v528
    %677 = vmatprep.subr.mxu0 0.0
    %678 = vmatpush1.msra.mxu0 %v529
    %679 = vmatprep.mubr.f32.mxu0 %v453
    %680 = vmatmul.mubr.f32.gmra.mrb[0].mxu0 %v452
    %v681 = vpop.f32.mrb[0].mxu0
    %v682 = vadd.f32 %v597, %v681
    %v683 = vpop.f32.mrb[0].mxu0
    %684 = vmatprep.mubr.f32.mxu0 %v457
    %685 = vmatmul.mubr.f32.gmra.mrb[0].mxu0 %v456
    %v686 = vpop.f32.mrb[0].mxu0
    %v687 = vadd.f32 %v602, %v686
    %v688 = vpop.f32.mrb[0].mxu0
    %689 = vmatprep.mubr.f32.mxu0 %v461
    %690 = vmatmul.mubr.f32.gmra.mrb[0].mxu0 %v460
    %v691 = vpop.f32.mrb[0].mxu0
    %v692 = vadd.f32 %v607, %v691
    %v693 = vpop.f32.mrb[0].mxu0
    %694 = vmatprep.mubr.f32.mxu0 %v465
    %695 = vmatmul.mubr.f32.gmra.mrb[0].mxu0 %v464
    %v696 = vpop.f32.mrb[0].mxu0
    %v697 = vadd.f32 %v612, %v696
    %v698 = vpop.f32.mrb[0].mxu0
    %699 = vdwg.mxu0
    %vm700 = vcmask 523264
    %v701 = vsel %vm700, %v682, 0.0
    %v702 = vsel %vm700, %v687, 0.0
    %v703 = vadd.f32 %v701, %v702
    %v704 = vrot.slane %v703, 4
    %v705 = vadd.f32 %v703, %v704
    %v706 = vrot.slane %v705, 2
    %v707 = vadd.f32 %v705, %v706
    %v708 = vrot.slane %v707, 1
    %v709 = vadd.f32 %v707, %v708
    %v710 = vsel %vm700, %v692, 0.0
    %v711 = vsel %vm700, %v697, 0.0
    %v712 = vadd.f32 %v710, %v711
    %v713 = vrot.slane %v712, 4
    %v714 = vadd.f32 %v712, %v713
    %v715 = vrot.slane %v714, 2
    %v716 = vadd.f32 %v714, %v715
    %v717 = vrot.slane %v716, 1
    %v718 = vadd.f32 %v716, %v717
    %v719 = vmul.f32 %v682, %v682
    %v720 = vmul.f32 %v687, %v687
    %v721 = vmul.f32 %v692, %v692
    %v722 = vmul.f32 %v697, %v697
    %v723 = vsel %vm700, %v719, 0.0
    %v724 = vsel %vm700, %v720, 0.0
    %v725 = vadd.f32 %v723, %v724
    %v726 = vrot.slane %v725, 4
    %v727 = vadd.f32 %v725, %v726
    %v728 = vrot.slane %v727, 2
    %v729 = vadd.f32 %v727, %v728
    %v730 = vrot.slane %v729, 1
    %v731 = vadd.f32 %v729, %v730
    %v732 = vsel %vm700, %v721, 0.0
    %v733 = vsel %vm700, %v722, 0.0
    %v734 = vadd.f32 %v732, %v733
    %v735 = vrot.slane %v734, 4
    %v736 = vadd.f32 %v734, %v735
    %v737 = vrot.slane %v736, 2
    %v738 = vadd.f32 %v736, %v737
    %v739 = vrot.slane %v738, 1
    %v740 = vadd.f32 %v738, %v739
    %v741 = vmul.f32 %v709, 0.0625
    %v742 = vmul.f32 %v718, 0.0625
    %v743 = vmul.f32 %v731, 0.0625
    %v744 = vmul.f32 %v740, 0.0625
    %v745 = vmul.f32 %v741, %v741
    %v746 = vmul.f32 %v742, %v742
    %v747 = vsub.f32 %v743, %v745
    %v748 = vsub.f32 %v744, %v746
    %v749 = vsub.f32 %v682, %v741
    %v750 = vsub.f32 %v687, %v741
    %v751 = vsub.f32 %v692, %v742
    %v752 = vsub.f32 %v697, %v742
    %v753 = vadd.f32 %v747, 1e-05
    %v754 = vadd.f32 %v748, 1e-05
    %v755 = vrsqrt.pop %v753
    %v756 = vrsqrt.pop %v754
    %v757 = vmul.f32 %v749, %v755
    %v758 = vmul.f32 %v750, %v755
    %v759 = vmul.f32 %v751, %v756
    %v760 = vmul.f32 %v752, %v756
    %v761 = vld [vmem:[%s5] sm:$0x1]
    %v763 = vlaneseq
    %v764 = vshrl.u32 %v763, 7
    %v765 = vsub.s32 0, %v764
    %v766 = vrot.slane %v761, %v765
    %v768 = vmul.f32 %v757, %v766
    %v769 = vmul.f32 %v758, %v766
    %v770 = vmul.f32 %v759, %v766
    %v771 = vmul.f32 %v760, %v766
    %v772 = vld [vmem:[%s6] sm:$0x1]
    %v774 = vlaneseq
    %v775 = vshrl.u32 %v774, 7
    %v776 = vsub.s32 0, %v775
    %v777 = vrot.slane %v772, %v776
    %v779 = vadd.f32 %v768, %v777
    %v780 = vadd.f32 %v769, %v777
    %v781 = vadd.f32 %v770, %v777
    %v782 = vadd.f32 %v771, %v777
    %s783 = sld [smem:[#allocation3]]
    %vm784 = vcmp.ge.f32.partialorder %v779, 0.0
    %vm785 = vcmp.ge.f32.partialorder %v780, 0.0
    %vm786 = vcmp.ge.f32.partialorder %v781, 0.0
    %vm787 = vcmp.ge.f32.partialorder %v782, 0.0
    %v788 = vstv %s783
    %v789 = vmul.f32 %v788, %v779
    %v790 = vmul.f32 %v788, %v780
    %v791 = vmul.f32 %v788, %v781
    %v792 = vmul.f32 %v788, %v782
    %v793 = vsel %vm784, %v779, %v789
    %v794 = vsel %vm785, %v780, %v790
    %v795 = vsel %vm786, %v781, %v791
    %v796 = vsel %vm787, %v782, %v792
    %v797 = vld [vmem:[%s8] sm:$0xff]
    %v798 = vld [vmem:[%s8 + $0x8] sm:$0xff]
    %v799 = vld [vmem:[%s8 + $0x10] sm:$0xff]
    %v800 = vld [vmem:[%s8 + $0x18] sm:$0xff]
    %v801 = vld [vmem:[%s8 + $0x20] sm:$0xff]
    %v802 = vld [vmem:[%s8 + $0x28] sm:$0xff]
    %v803 = vld [vmem:[%s8 + $0x30] sm:$0xff]
    %v804 = vld [vmem:[%s8 + $0x38] sm:$0xff]
    %v805 = vld [vmem:[%s9] sm:$0x1]
    %v807 = vlaneseq
    %v808 = vshrl.u32 %v807, 7
    %v809 = vsub.s32 0, %v808
    %v810 = vrot.slane %v805, %v809
    %v813 = vsel %vm700, %v793, 0
    %v816 = vsel %vm700, %v794, 0
    %v819 = vsel %vm700, %v795, 0
    %v822 = vsel %vm700, %v796, 0
    %824 = vmatprep.subr.mxu0 0.0
    %825 = vmatpush1.msra.mxu0 %v797
    %826 = vmatprep.subr.mxu0 0.0
    %827 = vmatpush1.msra.mxu0 %v798
    %828 = vmatprep.subr.mxu0 0.0
    %829 = vmatpush1.msra.mxu0 %v799
    %830 = vmatprep.subr.mxu0 0.0
    %831 = vmatpush1.msra.mxu0 %v800
    %832 = vmatprep.subr.mxu0 0.0
    %833 = vmatpush1.msra.mxu0 %v801
    %834 = vmatprep.subr.mxu0 0.0
    %835 = vmatpush1.msra.mxu0 %v802
    %836 = vmatprep.subr.mxu0 0.0
    %837 = vmatpush1.msra.mxu0 %v803
    %838 = vmatprep.subr.mxu0 0.0
    %839 = vmatpush1.msra.mxu0 %v804
    %840 = vmatprep.subr.mxu0 0.0
    %841 = vmatpush1.msra.mxu0 0.0
    %842 = vmatprep.subr.mxu0 0.0
    %843 = vmatpush1.msra.mxu0 0.0
    %844 = vmatprep.subr.mxu0 0.0
    %845 = vmatpush1.msra.mxu0 0.0
    %846 = vmatprep.subr.mxu0 0.0
    %847 = vmatpush1.msra.mxu0 0.0
    %848 = vmatprep.subr.mxu0 0.0
    %849 = vmatpush1.msra.mxu0 0.0
    %850 = vmatprep.subr.mxu0 0.0
    %851 = vmatpush1.msra.mxu0 0.0
    %852 = vmatprep.subr.mxu0 0.0
    %853 = vmatpush1.msra.mxu0 0.0
    %854 = vmatprep.subr.mxu0 0.0
    %855 = vmatpush1.msra.mxu0 0.0
    %856 = vmatprep.subr.mxu0 0.0
    %857 = vmatpush1.msra.mxu0 0.0
    %858 = vmatprep.subr.mxu0 0.0
    %859 = vmatpush1.msra.mxu0 0.0
    %860 = vmatprep.subr.mxu0 0.0
    %861 = vmatpush1.msra.mxu0 0.0
    %862 = vmatprep.subr.mxu0 0.0
    %863 = vmatpush1.msra.mxu0 0.0
    %864 = vmatprep.subr.mxu0 0.0
    %865 = vmatpush1.msra.mxu0 0.0
    %866 = vmatprep.subr.mxu0 0.0
    %867 = vmatpush1.msra.mxu0 0.0
    %868 = vmatprep.subr.mxu0 0.0
    %869 = vmatpush1.msra.mxu0 0.0
    %870 = vmatprep.subr.mxu0 0.0
    %871 = vmatpush1.msra.mxu0 0.0
    %872 = vmatprep.subr.mxu0 0.0
    %873 = vmatpush1.msra.mxu0 0.0
    %874 = vmatprep.subr.mxu0 0.0
    %875 = vmatpush1.msra.mxu0 0.0
    %876 = vmatprep.subr.mxu0 0.0
    %877 = vmatpush1.msra.mxu0 0.0
    %878 = vmatprep.subr.mxu0 0.0
    %879 = vmatpush1.msra.mxu0 0.0
    %880 = vmatprep.subr.mxu0 0.0
    %881 = vmatpush1.msra.mxu0 0.0
    %882 = vmatprep.subr.mxu0 0.0
    %883 = vmatpush1.msra.mxu0 0.0
    %884 = vmatprep.subr.mxu0 0.0
    %885 = vmatpush1.msra.mxu0 0.0
    %886 = vmatprep.subr.mxu0 0.0
    %887 = vmatpush1.msra.mxu0 0.0
    %888 = vmatprep.mubr.f32.mxu0 0.0
    %889 = vmatmul.mubr.f32.gmra.mrb[0].mxu0 %v813
    %v890 = vpop.f32.mrb[0].mxu0
    %v891 = vadd.f32 %v810, %v890
    %v892 = vpop.f32.mrb[0].mxu0
    %893 = vmatprep.mubr.f32.mxu0 0.0
    %894 = vmatmul.mubr.f32.gmra.mrb[0].mxu0 %v816
    %v895 = vpop.f32.mrb[0].mxu0
    %v896 = vadd.f32 %v810, %v895
    %v897 = vpop.f32.mrb[0].mxu0
    %898 = vmatprep.mubr.f32.mxu0 0.0
    %899 = vmatmul.mubr.f32.gmra.mrb[0].mxu0 %v819
    %v900 = vpop.f32.mrb[0].mxu0
    %v901 = vadd.f32 %v810, %v900
    %v902 = vpop.f32.mrb[0].mxu0
    %903 = vmatprep.mubr.f32.mxu0 0.0
    %904 = vmatmul.mubr.f32.gmra.mrb[0].mxu0 %v822
    %v905 = vpop.f32.mrb[0].mxu0
    %v906 = vadd.f32 %v810, %v905
    %v907 = vpop.f32.mrb[0].mxu0
    %908 = vdwg.mxu0
    %909 = vst [vmem:[#allocation4] sm:$0xff] %v891
    %910 = vst [vmem:[#allocation4 + $0x8] sm:$0xff] %v896
    %911 = vst [vmem:[#allocation4 + $0x10] sm:$0xff] %v901
    %912 = vst [vmem:[#allocation4 + $0x18] sm:$0xff] %v906
    // Predicated region
    $region42: #{tpu_custom_call.1} parent=1 // pred_check
      _
    $region43: #{tpu_custom_call.1} parent=1 // pred_check_branch
      %914 = sbr.rel (0) target = $region45
    $region44: #{tpu_custom_call.1} parent=1 // pred_region
      %s916 = ssub.s32 512, 512
      %917 = vsyncadd [#allocation5], %s916
      %s918 = sshll.u32 [#allocation4], 4
      %s919 = int_to_ptr.vmem [resolvable:$true] %s918
      %924 = dma.vmem_to_hbm [thread:$0]  %s919, 512, %s10, [#allocation5], 128, 128, 8
    $region45: #{tpu_custom_call.1} parent=1 // pred_fallthru
      _
    // Predicated region
    $region46: #{tpu_custom_call.1} parent=1 // pred_check
      _
    $region47: #{tpu_custom_call.1} parent=1 // pred_check_branch
      %926 = sbr.rel (0) target = $region49
    $region48: #{tpu_custom_call.1} parent=1 // pred_region
      %927 = dma.done [#allocation5], 512
    $region49: #{tpu_custom_call.1} parent=1 // pred_fallthru
      _
    %928 = vsyncpa [#allocation5], 1

</llo_original>
